<compile_context>
chip_gen: v7x
topology: tpu7x:2x2x1
jax: 0.10.0
libtpu: 0.0.40
codegen_flags: <defaults>
</compile_context>

<pallas_src>
import functools

import numpy as np
import jax
import jax.numpy as jnp
from jax.experimental import pallas as pl
from jax.experimental.pallas import tpu as pltpu


NUM_BODY_POINTS = 17
FOCAL_ALPHA = 0.25
# COCO keypoint sigmas used by OKSLoss(num_keypoints=17)
_COCO_SIGMAS = np.array(
    [.26, .25, .25, .35, .35, .79, .79, .72, .72,
     .62, .62, 1.07, 1.07, .87, .87, .89, .89], dtype=np.float32) / 10.0
_OKS_VARIANCES = (2.0 * _COCO_SIGMAS) ** 2  # [17]


def _round_up(x, m):
    return ((x + m - 1) // m) * m


# ----------------------------------------------------------------------------
# Kernel 1: sigmoid focal loss (gamma = 2), tiled over rows of [B*Q, C].
# Inputs per tile: logits block (TM, C) and int32 class ids (TM, 1).
# The one-hot target is built in-kernel (iota == class id), padded rows are
# masked, the loss is accumulated elementwise into a VMEM scratch and reduced
# to a single SMEM scalar on the last grid step.
# The wrapper returns sum(loss); loss_ce = sum / num_boxes (== reference
# sigmoid_focal_loss(...).mean(1).sum()/num_boxes * Q).
# ----------------------------------------------------------------------------
def _focal_sum_kernel(logits_ref, tgt_ref, out_ref, acc_ref, *, alpha, n_valid):
    i = pl.program_id(0)

    @pl.when(i == 0)
    def _init():
        acc_ref[...] = jnp.zeros_like(acc_ref)

    x = logits_ref[...].astype(jnp.float32)            # (TM, C)
    tgt = tgt_ref[...]                                  # (TM, 1) int32
    tm, c = x.shape

    # One-hot built in-register; class id == num_classes (or -1 padding) never
    # matches a column, matching the reference's [:, :, :-1] slice.
    cls = jax.lax.broadcasted_iota(jnp.int32, (tm, c), 1)
    t = (cls == tgt).astype(jnp.float32)

    # Single exp reused by both sigmoid and the stable BCE-with-logits term.
    e = jnp.exp(-jnp.abs(x))
    inv = pl.reciprocal(1.0 + e, approx=True)           # EUP vrcp (cheap slot)
    p = jnp.where(x >= 0.0, 1.0, e) * inv                # == sigmoid(x)
    ce = jnp.maximum(x, 0.0) - x * t + jnp.log1p(e)      # BCE with logits
    p_t = p * t + (1.0 - p) * (1.0 - t)
    q = 1.0 - p_t
    alpha_t = alpha * t + (1.0 - alpha) * (1.0 - t)
    loss = alpha_t * ce * q * q                          # gamma == 2

    # Mask rows added by padding to a multiple of the tile size.
    row = i * tm + jax.lax.broadcasted_iota(jnp.int32, (tm, c), 0)
    loss = jnp.where(row < n_valid, loss, 0.0)

    acc_ref[...] += loss                                 # VALU-only accumulate

    @pl.when(i == pl.num_programs(0) - 1)
    def _finalize():
        out_ref[0, 0] = jnp.sum(acc_ref[...])            # one XLU reduce at end


def focal_loss_sum(logits2d, target_classes2d, alpha, *, block_rows=512):
    rows, c = logits2d.shape
    tm = min(block_rows, _round_up(rows, 8))             # 512-row tiles fit VMEM on v5e/v6e/v7x
    rows_pad = _round_up(rows, tm)
    if rows_pad != rows:
        logits2d = jnp.pad(logits2d, ((0, rows_pad - rows), (0, 0)))
        target_classes2d = jnp.pad(target_classes2d, ((0, rows_pad - rows), (0, 0)),
                                   constant_values=-1)
    num_tiles = rows_pad // tm

    grid_spec = pltpu.PrefetchScalarGridSpec(
        num_scalar_prefetch=0,
        grid=(num_tiles,),
        in_specs=[pl.BlockSpec((tm, c), lambda i: (i, 0)),
                  pl.BlockSpec((tm, 1), lambda i: (i, 0))],
        out_specs=pl.BlockSpec((1, 1), lambda i: (0, 0),
                               memory_space=pltpu.MemorySpace.SMEM),
        scratch_shapes=[pltpu.VMEM((tm, c), jnp.float32)],
    )
    out = pl.pallas_call(
        functools.partial(_focal_sum_kernel, alpha=alpha, n_valid=rows),
        out_shape=jax.ShapeDtypeStruct((1, 1), jnp.float32),
        grid_spec=grid_spec,
        # The grid axis carries the accumulator scratch -> must stay sequential.
        # TODO(synk): on v7x (2 TCs) switch to per-tile partial outputs + "parallel".
        compiler_params=pltpu.CompilerParams(dimension_semantics=("arbitrary",)),
    )(logits2d, target_classes2d)
    return out[0, 0]


# ----------------------------------------------------------------------------
# Kernel 2: fused matched-row losses (box L1 + GIoU + keypoint L1 + OKS) from a
# single lane-packed operand  packed[N, 8 + 6K]:
#   [0:4]   src box (cxcywh)         [4:8]     tgt box (cxcywh)
#   [8:8+K] pred x   [8+K:8+2K] pred y   [8+2K:8+3K] gt x   [8+3K:8+4K] gt y
#   [8+4K:8+5K] visibility           [8+5K:8+6K] 2 * area * (2*sigma)^2
# Outputs (1,4) SMEM: [sum|L1 box|, sum(1-giou), sum kp L1 * vis, mean(1-oks)].
# ----------------------------------------------------------------------------
def _matched_loss_kernel(packed_ref, out_ref, *, num_kpts, eps):
    d = packed_ref[...].astype(jnp.float32)
    k = num_kpts

    # ---- boxes: L1 + diag GIoU ----
    s, t = d[:, 0:4], d[:, 4:8]
    box_l1 = jnp.sum(jnp.abs(s - t))

    def cxcywh_to_xyxy(b):
        cx, cy, w, h = b[:, 0:1], b[:, 1:2], b[:, 2:3], b[:, 3:4]
        return cx - 0.5 * w, cy - 0.5 * h, cx + 0.5 * w, cy + 0.5 * h

    sx0, sy0, sx1, sy1 = cxcywh_to_xyxy(s)
    tx0, ty0, tx1, ty1 = cxcywh_to_xyxy(t)
    area_s = (sx1 - sx0) * (sy1 - sy0)
    area_t = (tx1 - tx0) * (ty1 - ty0)
    ix0 = jnp.maximum(sx0, tx0)
    iy0 = jnp.maximum(sy0, ty0)
    ix1 = jnp.minimum(sx1, tx1)
    iy1 = jnp.minimum(sy1, ty1)
    inter = jnp.maximum(ix1 - ix0, 0.0) * jnp.maximum(iy1 - iy0, 0.0)
    union = area_s + area_t - inter
    iou = inter / jnp.maximum(union, eps)                # eps: degenerate boxes -> no NaN
    ex0 = jnp.minimum(sx0, tx0)
    ey0 = jnp.minimum(sy0, ty0)
    ex1 = jnp.maximum(sx1, tx1)
    ey1 = jnp.maximum(sy1, ty1)
    enc = jnp.maximum(ex1 - ex0, 0.0) * jnp.maximum(ey1 - ey0, 0.0)
    giou = iou - (enc - union) / jnp.maximum(enc, eps)
    giou_sum = jnp.sum(1.0 - giou)

    # ---- keypoints: visibility-weighted L1 + OKS (linear, mean over instances) ----
    o = 8
    px = d[:, o:o + k]
    py = d[:, o + k:o + 2 * k]
    gx = d[:, o + 2 * k:o + 3 * k]
    gy = d[:, o + 3 * k:o + 4 * k]
    v = d[:, o + 4 * k:o + 5 * k]
    denom = d[:, o + 5 * k:o + 6 * k]                    # 2 * area * (2*sigma)^2, eps-guarded

    dx = px - gx
    dy = py - gy
    # L1 * V_gt.repeat_interleave(2): x and y share the same visibility weight.
    pose_sum = jnp.sum((jnp.abs(dx) + jnp.abs(dy)) * v)

    e = jnp.exp(-(dx * dx + dy * dy) / denom) * v
    oks = jnp.sum(e, axis=1, keepdims=True) / (jnp.sum(v, axis=1, keepdims=True) + 1e-6)
    oks = jnp.maximum(oks, eps)
    oks_mean = jnp.mean(1.0 - oks)                       # OKSLoss(linear=True, reduction='mean')

    out_ref[0, 0] = box_l1
    out_ref[0, 1] = giou_sum
    out_ref[0, 2] = pose_sum
    out_ref[0, 3] = oks_mean


def matched_loss_sums(packed, num_kpts, eps=1e-6):
    out = pl.pallas_call(
        functools.partial(_matched_loss_kernel, num_kpts=num_kpts, eps=eps),
        out_shape=jax.ShapeDtypeStruct((1, 4), jnp.float32),
        in_specs=[pl.BlockSpec(memory_space=pltpu.MemorySpace.VMEM)],
        out_specs=pl.BlockSpec(memory_space=pltpu.MemorySpace.SMEM),
    )(packed)
    return out[0, 0], out[0, 1], out[0, 2], out[0, 3]


# ----------------------------------------------------------------------------
# Stub matcher (the Hungarian matcher is an external module in the original
# code): returns deterministic (src, tgt) index pairs per batch element.
# ----------------------------------------------------------------------------
class StubMatcher:
    def __init__(self, indices):
        self._indices = indices

    def __call__(self, outputs, targets):
        return (self._indices, {})  # (list of (src, tgt), cost_mean_dict)


class SetCriterionPallas:
    """JAX/Pallas port of SetCriterion.forward for the active losses
    ['labels', 'cardinality', 'boxes', 'keypoints']."""

    def __init__(self, num_classes, matcher, weight_dict, focal_alpha, losses,
                 num_box_decoder_layers=2, num_body_points=17):
        self.num_classes = num_classes
        self.matcher = matcher
        self.weight_dict = weight_dict
        self.losses = losses
        self.focal_alpha = focal_alpha
        self.num_body_points = num_body_points
        self.num_box_decoder_layers = num_box_decoder_layers
        self.oks_variances = np.asarray(_OKS_VARIANCES[:num_body_points], dtype=np.float32)

    # ---- helpers ------------------------------------------------------------
    @staticmethod
    def _get_src_permutation_idx(indices):
        batch_idx = jnp.concatenate(
            [jnp.full_like(src, i) for i, (src, _) in enumerate(indices)])
        src_idx = jnp.concatenate([src for src, _ in indices])
        return batch_idx, src_idx

    def _packed_matched_rows(self, outputs, targets, indices):
        """Gather matched rows and pack box + keypoint operands into one
        lane-dense [N, 8 + 6K] f32 array for the fused matched-loss kernel."""
        # TODO(synk): the gather itself could be moved in-kernel via
        # PrefetchScalarGridSpec + pl.Element row index_map; N is tiny so it
        # stays as XLA glue here.
        indices = indices[0]
        K = self.num_body_points
        batch_idx, src_idx = self._get_src_permutation_idx(indices)
        src_boxes = outputs['pred_boxes'][batch_idx, src_idx]               # [N, 4]
        tgt_boxes = jnp.concatenate(
            [t['boxes'][i] for t, (_, i) in zip(targets, indices)], axis=0)
        src_kp = outputs['pred_keypoints'][batch_idx, src_idx]              # [N, 3K]
        tgt_kp = jnp.concatenate(
            [t['keypoints'][i] for t, (_, i) in zip(targets, indices)], axis=0)
        area = jnp.concatenate(
            [t['area'][i] for t, (_, i) in zip(targets, indices)], axis=0)  # [N]

        n = src_boxes.shape[0]
        zp = src_kp[:, :2 * K].reshape(n, K, 2)
        zg = tgt_kp[:, :2 * K].reshape(n, K, 2)
        v = tgt_kp[:, 2 * K:]
        var = jnp.asarray(self.oks_variances, dtype=jnp.float32)[None, :]   # [1, K]
        denom = 2.0 * jnp.maximum(area, 1e-6)[:, None] * var                # [N, K]

        packed = jnp.concatenate(
            [src_boxes, tgt_boxes,
             zp[..., 0], zp[..., 1], zg[..., 0], zg[..., 1], v, denom],
            axis=1).astype(jnp.float32)
        return packed, n

    # ---- individual losses --------------------------------------------------
    def loss_labels(self, outputs, targets, indices, num_boxes, log=True):
        indices = indices[0]
        logits = outputs['pred_logits']
        B, Q, C = logits.shape
        batch_idx, src_idx = self._get_src_permutation_idx(indices)
        target_classes_o = jnp.concatenate(
            [t['labels'][J] for t, (_, J) in zip(targets, indices)]).astype(jnp.int32)
        target_classes = jnp.full((B, Q), self.num_classes, dtype=jnp.int32)
        target_classes = target_classes.at[batch_idx, src_idx].set(target_classes_o)

        # One-hot is built inside the kernel from the int32 ids; nothing the
        # size of the logits is materialized besides the logits themselves.
        focal_sum = focal_loss_sum(logits.reshape(B * Q, C),
                                   target_classes.reshape(B * Q, 1),
                                   self.focal_alpha)
        # sigmoid_focal_loss(...).mean(1).sum()/num_boxes * Q == sum / num_boxes
        losses = {'loss_ce': focal_sum / num_boxes}
        if log:
            matched = logits[batch_idx, src_idx]
            acc = 100.0 * jnp.mean(
                (jnp.argmax(matched, axis=-1) == target_classes_o).astype(jnp.float32))
            losses['class_error'] = 100.0 - acc
        return losses

    def loss_cardinality(self, outputs, targets, indices, num_boxes):
        # Logging-only metric; plain JAX glue.
        logits = outputs['pred_logits']
        C = logits.shape[-1]
        tgt_lengths = jnp.asarray([t['labels'].shape[0] for t in targets],
                                  dtype=jnp.float32)
        card_pred = jnp.sum((jnp.argmax(logits, axis=-1) != C - 1).astype(jnp.int32),
                            axis=1).astype(jnp.float32)
        return {'cardinality_error': jnp.mean(jnp.abs(card_pred - tgt_lengths))}

    def loss_boxes_keypoints(self, outputs, targets, indices, num_boxes):
        """Fused box + keypoint losses: one pallas_call for both."""
        packed, n = self._packed_matched_rows(outputs, targets, indices)
        if n == 0:
            z = jnp.float32(0.0)
            return {'loss_bbox': z, 'loss_giou': z, 'loss_keypoints': z, 'loss_oks': z}
        l1, giou, pose, oks_mean = matched_loss_sums(packed, self.num_body_points)
        return {
            'loss_bbox': l1 / num_boxes,
            'loss_giou': giou / num_boxes,
            'loss_keypoints': pose / num_boxes,
            # OKSLoss(reduction='mean') returns a scalar; the reference then does
            # .sum()/num_boxes, i.e. mean(1 - oks)/num_boxes (not double-normalized).
            'loss_oks': oks_mean / num_boxes,
        }

    def loss_boxes(self, outputs, targets, indices, num_boxes):
        d = self.loss_boxes_keypoints(outputs, targets, indices, num_boxes)
        return {k: d[k] for k in ('loss_bbox', 'loss_giou')}

    def loss_keypoints(self, outputs, targets, indices, num_boxes):
        d = self.loss_boxes_keypoints(outputs, targets, indices, num_boxes)
        return {k: d[k] for k in ('loss_keypoints', 'loss_oks')}

    def get_loss(self, loss, outputs, targets, indices, num_boxes, **kwargs):
        loss_map = {'labels': self.loss_labels,
                    'cardinality': self.loss_cardinality,
                    'boxes': self.loss_boxes,
                    'keypoints': self.loss_keypoints}
        # TODO(synk): dn_label / dn_bbox / dn_keypoints / matching losses need the
        # denoising-query dict plumbing and matcher cost stats; not ported here.
        assert loss in loss_map
        return loss_map[loss](outputs, targets, indices, num_boxes, **kwargs)

    def forward(self, outputs, targets):
        num_boxes = sum(int(t['labels'].shape[0]) for t in targets)
        num_boxes = float(max(num_boxes, 1))
        # TODO(synk): distributed all_reduce of num_boxes omitted (single host).
        indices = self.matcher(outputs, targets)
        losses = {}
        fuse_box_kp = ('boxes' in self.losses) and ('keypoints' in self.losses)
        fused_done = False
        for loss in self.losses:
            if fuse_box_kp and loss in ('boxes', 'keypoints'):
                if not fused_done:
                    losses.update(
                        self.loss_boxes_keypoints(outputs, targets, indices, num_boxes))
                    fused_done = True
                continue
            losses.update(self.get_loss(loss, outputs, targets, indices, num_boxes))
        # TODO(synk): aux_outputs / interm_outputs branches are the same losses
        # applied to intermediate decoder layers; omitted in this synthetic setup.
        return losses


if __name__ == "__main__":
    B, Q, C, T, K = 2, 16, 4, 3, NUM_BODY_POINTS

    key = jax.random.PRNGKey(0)
    ks = jax.random.split(key, 12)

    pred_logits = jax.random.normal(ks[0], (B, Q, C), dtype=jnp.float32)
    pred_boxes = jnp.concatenate([
        0.2 + 0.6 * jax.random.uniform(ks[1], (B, Q, 2)),   # cx, cy
        0.1 + 0.2 * jax.random.uniform(ks[2], (B, Q, 2)),   # w, h
    ], axis=-1).astype(jnp.float32)
    pred_keypoints = jnp.concatenate([
        jax.random.uniform(ks[3], (B, Q, 2 * K)),            # interleaved x,y
        jax.random.uniform(ks[4], (B, Q, K)),                 # predicted vis (unused)
    ], axis=-1).astype(jnp.float32)

    outputs = {'pred_logits': pred_logits,
               'pred_boxes': pred_boxes,
               'pred_keypoints': pred_keypoints}

    targets = []
    for b in range(B):
        kb = jax.random.split(ks[5 + b], 6)
        labels = jax.random.randint(kb[0], (T,), 0, C)
        boxes = jnp.concatenate([
            0.2 + 0.6 * jax.random.uniform(kb[1], (T, 2)),
            0.1 + 0.2 * jax.random.uniform(kb[2], (T, 2)),
        ], axis=-1).astype(jnp.float32)
        coords = jax.random.uniform(kb[3], (T, 2 * K)).astype(jnp.float32)
        vis = (jax.random.uniform(kb[4], (T, K)) > 0.3).astype(jnp.float32)
        keypoints = jnp.concatenate([coords, vis], axis=-1)
        area = (0.1 + 0.4 * jax.random.uniform(kb[5], (T,))).astype(jnp.float32)
        targets.append({'labels': labels, 'boxes': boxes,
                        'keypoints': keypoints, 'area': area})

    # Deterministic stub Hungarian matcher output: (src query idx, tgt idx) per image.
    indices = [
        (jnp.asarray([1, 4, 9], dtype=jnp.int32), jnp.asarray([2, 0, 1], dtype=jnp.int32)),
        (jnp.asarray([3, 7, 12], dtype=jnp.int32), jnp.asarray([0, 2, 1], dtype=jnp.int32)),
    ]
    matcher = StubMatcher(indices)

    criterion = SetCriterionPallas(
        num_classes=C, matcher=matcher, weight_dict={},
        focal_alpha=FOCAL_ALPHA,
        losses=['labels', 'cardinality', 'boxes', 'keypoints'],
        num_body_points=K)

    losses = criterion.forward(outputs, targets)
    for v in jax.tree_util.tree_leaves(losses):
        jax.block_until_ready(v)
    print("KERNEL_OK")
</pallas_src>

<mosaic_0001>
module attributes {stable_mosaic.version = 11 : i64} {
  func.func @_focal_sum_kernel(%arg0: i32, %arg1: memref<32x4xf32, #tpu.memory_space<vmem>>, %arg2: memref<32x1xi32, #tpu.memory_space<vmem>>, %arg3: memref<1x1xf32, #tpu.memory_space<smem>>, %arg4: memref<32x4xf32, #tpu.memory_space<vmem>>) attributes {dimension_semantics = [#tpu.dimension_semantics<arbitrary>], iteration_bounds = array<i64: 1>, scalar_prefetch = 0 : i64, scratch_operands = 1 : i64, tpu.core_type = #tpu.core_type<tc>, window_params = [{transform_indices = @transform_0, window_bounds = array<i64: 32, 4>}, {transform_indices = @transform_1, window_bounds = array<i64: 32, 1>}, {transform_indices = @transform_2, window_bounds = array<i64: 1, 1>}]} {
    %c0_i32 = arith.constant 0 : i32
    %0 = arith.cmpi eq, %arg0, %c0_i32 : i32
    %1 = arith.extui %0 : i1 to i32
    %c0_i32_0 = arith.constant 0 : i32
    %2 = arith.cmpi ne, %1, %c0_i32_0 : i32
    scf.if %2 {
      %cst_22 = arith.constant 0.000000e+00 : f32
      %61 = vector.broadcast %cst_22 : f32 to vector<32x4xf32>
      %c0_23 = arith.constant 0 : index
      %c0_24 = arith.constant 0 : index
      %62 = vector.load %arg4[%c0_23, %c0_24] : memref<32x4xf32, #tpu.memory_space<vmem>>, vector<32x4xf32>
      tpu.vector_store %arg4[%c0_23, %c0_24], %61 {strides = array<i32>} : memref<32x4xf32, #tpu.memory_space<vmem>>, vector<32x4xf32>,
    } else {
    }
    %c0 = arith.constant 0 : index
    %c0_1 = arith.constant 0 : index
    %3 = vector.load %arg1[%c0, %c0_1] : memref<32x4xf32, #tpu.memory_space<vmem>>, vector<32x4xf32>
    %c0_2 = arith.constant 0 : index
    %c0_3 = arith.constant 0 : index
    %4 = vector.load %arg2[%c0_2, %c0_3] : memref<32x1xi32, #tpu.memory_space<vmem>>, vector<32x1xi32>
    %5 = tpu.iota {dimensions = array<i32: 1>} : vector<32x4xi32>
    %6 = vector.broadcast %4 : vector<32x1xi32> to vector<32x4xi32>
    %7 = arith.cmpi eq, %5, %6 : vector<32x4xi32>
    %8 = arith.extui %7 : vector<32x4xi1> to vector<32x4xi32>
    %9 = arith.sitofp %8 : vector<32x4xi32> to vector<32x4xf32>
    %10 = math.absf %3 : vector<32x4xf32>
    %cst = arith.constant 0.000000e+00 : f32
    %11 = vector.broadcast %cst : f32 to vector<32x4xf32>
    %12 = arith.subf %11, %10 : vector<32x4xf32>
    %13 = math.exp %12 : vector<32x4xf32>
    %cst_4 = arith.constant 1.000000e+00 : f32
    %14 = vector.broadcast %cst_4 : f32 to vector<32x4xf32>
    %15 = arith.addf %14, %13 : vector<32x4xf32>
    %16 = tpu.reciprocal %15 {approx = true} : vector<32x4xf32> -> vector<32x4xf32>
    %cst_5 = arith.constant 0.000000e+00 : f32
    %17 = vector.broadcast %cst_5 : f32 to vector<32x4xf32>
    %18 = arith.cmpf oge, %3, %17 : vector<32x4xf32>
    %cst_6 = arith.constant 1.000000e+00 : f32
    %19 = vector.broadcast %cst_6 : f32 to vector<32x4xf32>
    %20 = arith.select %18, %19, %13 : vector<32x4xi1>, vector<32x4xf32>
    %21 = arith.mulf %20, %16 : vector<32x4xf32>
    %cst_7 = arith.constant 0.000000e+00 : f32
    %22 = vector.broadcast %cst_7 : f32 to vector<32x4xf32>
    %23 = arith.maximumf %3, %22 : vector<32x4xf32>
    %24 = arith.mulf %3, %9 : vector<32x4xf32>
    %25 = arith.subf %23, %24 : vector<32x4xf32>
    %26 = math.log1p %13 : vector<32x4xf32>
    %27 = arith.addf %25, %26 : vector<32x4xf32>
    %28 = arith.mulf %21, %9 : vector<32x4xf32>
    %cst_8 = arith.constant 1.000000e+00 : f32
    %29 = vector.broadcast %cst_8 : f32 to vector<32x4xf32>
    %30 = arith.subf %29, %21 : vector<32x4xf32>
    %cst_9 = arith.constant 1.000000e+00 : f32
    %31 = vector.broadcast %cst_9 : f32 to vector<32x4xf32>
    %32 = arith.subf %31, %9 : vector<32x4xf32>
    %33 = arith.mulf %30, %32 : vector<32x4xf32>
    %34 = arith.addf %28, %33 : vector<32x4xf32>
    %cst_10 = arith.constant 1.000000e+00 : f32
    %35 = vector.broadcast %cst_10 : f32 to vector<32x4xf32>
    %36 = arith.subf %35, %34 : vector<32x4xf32>
    %cst_11 = arith.constant 2.500000e-01 : f32
    %37 = vector.broadcast %cst_11 : f32 to vector<32x4xf32>
    %38 = arith.mulf %37, %9 : vector<32x4xf32>
    %cst_12 = arith.constant 1.000000e+00 : f32
    %39 = vector.broadcast %cst_12 : f32 to vector<32x4xf32>
    %40 = arith.subf %39, %9 : vector<32x4xf32>
    %cst_13 = arith.constant 7.500000e-01 : f32
    %41 = vector.broadcast %cst_13 : f32 to vector<32x4xf32>
    %42 = arith.mulf %41, %40 : vector<32x4xf32>
    %43 = arith.addf %38, %42 : vector<32x4xf32>
    %44 = arith.mulf %43, %27 : vector<32x4xf32>
    %45 = arith.mulf %44, %36 : vector<32x4xf32>
    %46 = arith.mulf %45, %36 : vector<32x4xf32>
    %c32_i32 = arith.constant 32 : i32
    %47 = arith.muli %arg0, %c32_i32 : i32
    %48 = tpu.iota {dimensions = array<i32: 0>} : vector<32x4xi32>
    %49 = vector.broadcast %47 : i32 to vector<32x4xi32>
    %50 = arith.addi %49, %48 : vector<32x4xi32>
    %c32_i32_14 = arith.constant 32 : i32
    %51 = vector.broadcast %c32_i32_14 : i32 to vector<32x4xi32>
    %52 = arith.cmpi slt, %50, %51 : vector<32x4xi32>
    %cst_15 = arith.constant 0.000000e+00 : f32
    %53 = vector.broadcast %cst_15 : f32 to vector<32x4xf32>
    %54 = arith.select %52, %46, %53 : vector<32x4xi1>, vector<32x4xf32>
    %c0_16 = arith.constant 0 : index
    %c0_17 = arith.constant 0 : index
    %55 = vector.load %arg4[%c0_16, %c0_17] : memref<32x4xf32, #tpu.memory_space<vmem>>, vector<32x4xf32>
    %56 = arith.addf %55, %54 : vector<32x4xf32>
    %c0_18 = arith.constant 0 : index
    %c0_19 = arith.constant 0 : index
    %57 = vector.load %arg4[%c0_18, %c0_19] : memref<32x4xf32, #tpu.memory_space<vmem>>, vector<32x4xf32>
    tpu.vector_store %arg4[%c0_18, %c0_19], %56 {strides = array<i32>} : memref<32x4xf32, #tpu.memory_space<vmem>>, vector<32x4xf32>,
    %c0_i32_20 = arith.constant 0 : i32
    %58 = arith.cmpi eq, %arg0, %c0_i32_20 : i32
    %59 = arith.extui %58 : i1 to i32
    %c0_i32_21 = arith.constant 0 : i32
    %60 = arith.cmpi ne, %59, %c0_i32_21 : i32
    scf.if %60 {
      %c0_22 = arith.constant 0 : index
      %c0_23 = arith.constant 0 : index
      %61 = vector.load %arg4[%c0_22, %c0_23] : memref<32x4xf32, #tpu.memory_space<vmem>>, vector<32x4xf32>
      %62 = vector.shape_cast %61 : vector<32x4xf32> to vector<1x32x4xf32>
      %cst_24 = arith.constant dense<0.000000e+00> : vector<1xf32>
      %63 = vector.multi_reduction <add>, %62, %cst_24 [1, 2] : vector<1x32x4xf32> to vector<1xf32>
      %64 = vector.shape_cast %63 : vector<1xf32> to vector<1x1x1xf32>
      %65 = vector.extract %64[0, 0, 0] : f32 from vector<1x1x1xf32>
      %c0_25 = arith.constant 0 : index
      %c0_26 = arith.constant 0 : index
      %66 = memref.load %arg3[%c0_25, %c0_26] : memref<1x1xf32, #tpu.memory_space<smem>>
      memref.store %65, %arg3[%c0_25, %c0_26] : memref<1x1xf32, #tpu.memory_space<smem>>
    } else {
    }
    return
  }
  func.func @transform_0(%arg0: i32) -> (i32, i32) {
    %c0_i32 = arith.constant 0 : i32
    %c0_i32_0 = arith.constant 0 : i32
    return %arg0, %c0_i32 : i32, i32
  }
  func.func @transform_1(%arg0: i32) -> (i32, i32) {
    %c0_i32 = arith.constant 0 : i32
    %c0_i32_0 = arith.constant 0 : i32
    return %arg0, %c0_i32 : i32, i32
  }
  func.func @transform_2(%arg0: i32) -> (i32, i32) {
    %c0_i32 = arith.constant 0 : i32
    %c0_i32_0 = arith.constant 0 : i32
    %c0_i32_1 = arith.constant 0 : i32
    return %c0_i32, %c0_i32_0 : i32, i32
  }
}

</mosaic_0001>

<llo_original>
// kernel: tpu_custom_call.1
$region0: #{tpu_custom_call.1}
  #allocation0 [shape = 'u32[]', space=smem, size = 0x4, offset = 0x4, fixed_abs, tag = 'smem constant byte address 0x4 - core index']
  #allocation1 [shape = 'u32[144,128]{1,0:T(1,128)}', space=vmem, size = 0x12000, scoped, tag = 'internal scratch']
  #allocation2 [shape = 'f32[32,4]{1,0:T(8,128)}', space=vmem, size = 0x4000, scoped, tag = 'scratch operand']
  %s0 = inlined_call_operand.vmem [shape: f32[32,4], index: 0, kind: input, shape index: {}]
  %s1 = inlined_call_operand.vmem [shape: s32[32,1], index: 1, kind: input, shape index: {}]
  %s2 = inlined_call_operand.hbm [shape: f32[1,1], index: 2, kind: output, shape index: {}]
  %s3 = sld [smem:[#allocation0]]
  $region26: #{tpu_custom_call.1} parent=0
    _
  %s5 = ssub.s32 1, %s3
  %s6 = scalar_select 0, %s5, %s3
  $region1: #{tpu_custom_call.1} parent=0
    #allocation3 [shape = 'u8[512]{0}', space=smem, size = 0x200, scoped, tag = 'output window, operand 0, single buffered']
    #allocation4 [shape = 's32[1]{0}', space=sflag, size = 0x4, scoped, tag = 'scoped memory for tpu_custom_call.1']
    %7 = vsyncpa [#allocation4], 0
    // Predicated region
    $region2: #{tpu_custom_call.1} parent=1 // pred_check
      _
    $region3: #{tpu_custom_call.1} parent=1 // pred_check_branch
      %9 = sbr.rel (0) target = $region5
    $region4: #{tpu_custom_call.1} parent=1 // pred_region
      _
    $region5: #{tpu_custom_call.1} parent=1 // pred_fallthru
      _
    // Predicated region
    $region6: #{tpu_custom_call.1} parent=1 // pred_check
      _
    $region7: #{tpu_custom_call.1} parent=1 // pred_check_branch
      %11 = sbr.rel (0) target = $region9
    $region8: #{tpu_custom_call.1} parent=1 // pred_region
      _
    $region9: #{tpu_custom_call.1} parent=1 // pred_fallthru
      _
    %p12 = scmp.eq.s32.totalorder 0, 0
    // Predicated region
    $region10: #{tpu_custom_call.1} parent=1 // pred_check
      %p13 = pneg %p12
    $region11: #{tpu_custom_call.1} parent=1 // pred_check_branch
      %15 = sbr.rel (%p13) target = $region13
    $region12: #{tpu_custom_call.1} parent=1 // pred_region
      %vm16 = vcmask 31744
      %17 = vst.msk [vmem:[#allocation2] sm:$0xff] %vm16, 0.0
      %18 = vst.msk [vmem:[#allocation2 + $0x8] sm:$0xff] %vm16, 0.0
      %19 = vst.msk [vmem:[#allocation2 + $0x10] sm:$0xff] %vm16, 0.0
      %20 = vst.msk [vmem:[#allocation2 + $0x18] sm:$0xff] %vm16, 0.0
    $region13: #{tpu_custom_call.1} parent=1 // pred_fallthru
      _
    %v21 = vld [vmem:[%s0] sm:$0xff]
    %v22 = vld [vmem:[%s0 + $0x8] sm:$0xff]
    %v23 = vld [vmem:[%s0 + $0x10] sm:$0xff]
    %v24 = vld [vmem:[%s0 + $0x18] sm:$0xff]
    %v25 = vld [vmem:[%s1] sm:$0xff]
    %v26 = vld [vmem:[%s1 + $0x8] sm:$0xff]
    %v27 = vld [vmem:[%s1 + $0x10] sm:$0xff]
    %v28 = vld [vmem:[%s1 + $0x18] sm:$0xff]
    %v29 = vlaneseq
    %v30 = vand.u32 %v29, 127
    %31 = vset.pattern.permute.xlu0 0
    %32 = vperm.xlu0 %31, %v25
    %v33 = vpop.permute.xlu0 %32
    %34 = vset.pattern.permute.xlu0 0
    %35 = vperm.xlu0 %34, %v26
    %v36 = vpop.permute.xlu0 %35
    %37 = vset.pattern.permute.xlu0 0
    %38 = vperm.xlu0 %37, %v27
    %v39 = vpop.permute.xlu0 %38
    %40 = vset.pattern.permute.xlu0 0
    %41 = vperm.xlu0 %40, %v28
    %v42 = vpop.permute.xlu0 %41
    %vm43 = vcmp.eq.s32.totalorder %v30, %v33
    %vm44 = vcmp.eq.s32.totalorder %v30, %v36
    %vm45 = vcmp.eq.s32.totalorder %v30, %v39
    %vm46 = vcmp.eq.s32.totalorder %v30, %v42
    %v47 = vsel %vm43, 1, 0
    %v48 = vsel %vm44, 1, 0
    %v49 = vsel %vm45, 1, 0
    %v50 = vsel %vm46, 1, 0
    %v51 = vcvt.s32.f32 %v47
    %v52 = vcvt.s32.f32 %v48
    %v53 = vcvt.s32.f32 %v49
    %v54 = vcvt.s32.f32 %v50
    %v55 = vand.u32 2147483647, %v21
    %v56 = vand.u32 2147483647, %v22
    %v57 = vand.u32 2147483647, %v23
    %v58 = vand.u32 2147483647, %v24
    %v59 = vsub.f32 0.0, %v55
    %v60 = vsub.f32 0.0, %v56
    %v61 = vsub.f32 0.0, %v57
    %v62 = vsub.f32 0.0, %v58
    %v63 = vmul.f32 %v59, 1.442695
    %v64 = vpow.pop %v63
    %v65 = vmul.f32 %v60, 1.442695
    %v66 = vpow.pop %v65
    %v67 = vmul.f32 %v61, 1.442695
    %v68 = vpow.pop %v67
    %v69 = vmul.f32 %v62, 1.442695
    %v70 = vpow.pop %v69
    %v71 = vadd.f32 %v64, 1.0
    %v72 = vadd.f32 %v66, 1.0
    %v73 = vadd.f32 %v68, 1.0
    %v74 = vadd.f32 %v70, 1.0
    %v75 = vrcp.pop %v71
    %v76 = vrcp.pop %v72
    %v77 = vrcp.pop %v73
    %v78 = vrcp.pop %v74
    %vm79 = vcmp.ge.f32.partialorder %v21, 0.0
    %vm80 = vcmp.ge.f32.partialorder %v22, 0.0
    %vm81 = vcmp.ge.f32.partialorder %v23, 0.0
    %vm82 = vcmp.ge.f32.partialorder %v24, 0.0
    %v83 = vsel %vm79, 1.0, %v64
    %v84 = vsel %vm80, 1.0, %v66
    %v85 = vsel %vm81, 1.0, %v68
    %v86 = vsel %vm82, 1.0, %v70
    %v87 = vmul.f32 %v83, %v75
    %v88 = vmul.f32 %v84, %v76
    %v89 = vmul.f32 %v85, %v77
    %v90 = vmul.f32 %v86, %v78
    %v91 = vmax.f32 %v21, 0.0
    %v92 = vmax.f32 %v22, 0.0
    %v93 = vmax.f32 %v23, 0.0
    %v94 = vmax.f32 %v24, 0.0
    %v95 = vmul.f32 %v21, %v51
    %v96 = vmul.f32 %v22, %v52
    %v97 = vmul.f32 %v23, %v53
    %v98 = vmul.f32 %v24, %v54
    %v99 = vsub.f32 %v91, %v95
    %v100 = vsub.f32 %v92, %v96
    %v101 = vsub.f32 %v93, %v97
    %v102 = vsub.f32 %v94, %v98
    %v103 = vadd.f32 %v64, 1.0
    %v104 = vlog2.pop %v103
    %v105 = vmul.f32 %v104, 0.6931472
    %v106 = vmul.f32 -0.5, %v64
    %v107 = vadd.f32 %v106, 1.0
    %v108 = vmul.f32 %v107, %v64
    %v109 = vand.u32 2147483647, %v64
    %vm110 = vcmp.lt.f32.partialorder %v109, 0.0004427343
    %v111 = vsel %vm110, %v108, %v105
    %v112 = vadd.f32 %v66, 1.0
    %v113 = vlog2.pop %v112
    %v114 = vmul.f32 %v113, 0.6931472
    %v115 = vmul.f32 -0.5, %v66
    %v116 = vadd.f32 %v115, 1.0
    %v117 = vmul.f32 %v116, %v66
    %v118 = vand.u32 2147483647, %v66
    %vm119 = vcmp.lt.f32.partialorder %v118, 0.0004427343
    %v120 = vsel %vm119, %v117, %v114
    %v121 = vadd.f32 %v68, 1.0
    %v122 = vlog2.pop %v121
    %v123 = vmul.f32 %v122, 0.6931472
    %v124 = vmul.f32 -0.5, %v68
    %v125 = vadd.f32 %v124, 1.0
    %v126 = vmul.f32 %v125, %v68
    %v127 = vand.u32 2147483647, %v68
    %vm128 = vcmp.lt.f32.partialorder %v127, 0.0004427343
    %v129 = vsel %vm128, %v126, %v123
    %v130 = vadd.f32 %v70, 1.0
    %v131 = vlog2.pop %v130
    %v132 = vmul.f32 %v131, 0.6931472
    %v133 = vmul.f32 -0.5, %v70
    %v134 = vadd.f32 %v133, 1.0
    %v135 = vmul.f32 %v134, %v70
    %v136 = vand.u32 2147483647, %v70
    %vm137 = vcmp.lt.f32.partialorder %v136, 0.0004427343
    %v138 = vsel %vm137, %v135, %v132
    %v139 = vadd.f32 %v99, %v111
    %v140 = vadd.f32 %v100, %v120
    %v141 = vadd.f32 %v101, %v129
    %v142 = vadd.f32 %v102, %v138
    %v143 = vmul.f32 %v87, %v51
    %v144 = vmul.f32 %v88, %v52
    %v145 = vmul.f32 %v89, %v53
    %v146 = vmul.f32 %v90, %v54
    %v147 = vsub.f32 1.0, %v87
    %v148 = vsub.f32 1.0, %v88
    %v149 = vsub.f32 1.0, %v89
    %v150 = vsub.f32 1.0, %v90
    %v151 = vsub.f32 1.0, %v51
    %v152 = vsub.f32 1.0, %v52
    %v153 = vsub.f32 1.0, %v53
    %v154 = vsub.f32 1.0, %v54
    %v155 = vmul.f32 %v147, %v151
    %v156 = vmul.f32 %v148, %v152
    %v157 = vmul.f32 %v149, %v153
    %v158 = vmul.f32 %v150, %v154
    %v159 = vadd.f32 %v143, %v155
    %v160 = vadd.f32 %v144, %v156
    %v161 = vadd.f32 %v145, %v157
    %v162 = vadd.f32 %v146, %v158
    %v163 = vsub.f32 1.0, %v159
    %v164 = vsub.f32 1.0, %v160
    %v165 = vsub.f32 1.0, %v161
    %v166 = vsub.f32 1.0, %v162
    %v167 = vmul.f32 %v51, 0.25
    %v168 = vmul.f32 %v52, 0.25
    %v169 = vmul.f32 %v53, 0.25
    %v170 = vmul.f32 %v54, 0.25
    %v171 = vmul.f32 %v151, 0.75
    %v172 = vmul.f32 %v152, 0.75
    %v173 = vmul.f32 %v153, 0.75
    %v174 = vmul.f32 %v154, 0.75
    %v175 = vadd.f32 %v167, %v171
    %v176 = vadd.f32 %v168, %v172
    %v177 = vadd.f32 %v169, %v173
    %v178 = vadd.f32 %v170, %v174
    %v179 = vmul.f32 %v175, %v139
    %v180 = vmul.f32 %v176, %v140
    %v181 = vmul.f32 %v177, %v141
    %v182 = vmul.f32 %v178, %v142
    %v183 = vmul.f32 %v179, %v163
    %v184 = vmul.f32 %v180, %v164
    %v185 = vmul.f32 %v181, %v165
    %v186 = vmul.f32 %v182, %v166
    %v187 = vmul.f32 %v183, %v163
    %v188 = vmul.f32 %v184, %v164
    %v189 = vmul.f32 %v185, %v165
    %v190 = vmul.f32 %v186, %v166
    %s191 = smul.u32 0, 32
    %v192 = vlaneseq
    %v193 = vshrl.u32 %v192, 7
    %v194 = vadd.s32 %v193, 8
    %v195 = vadd.s32 %v193, 16
    %v196 = vadd.s32 %v193, 24
    %v197 = vstv %s191
    %v198 = vadd.s32 %v197, %v193
    %v199 = vadd.s32 %v197, %v194
    %v200 = vadd.s32 %v197, %v195
    %v201 = vadd.s32 %v197, %v196
    %vm202 = vcmp.lt.s32.totalorder %v198, 32
    %vm203 = vcmp.lt.s32.totalorder %v199, 32
    %vm204 = vcmp.lt.s32.totalorder %v200, 32
    %vm205 = vcmp.lt.s32.totalorder %v201, 32
    %v206 = vsel %vm202, %v187, 0.0
    %v207 = vsel %vm203, %v188, 0.0
    %v208 = vsel %vm204, %v189, 0.0
    %v209 = vsel %vm205, %v190, 0.0
    %v210 = vld [vmem:[#allocation2] sm:$0xff]
    %v211 = vld [vmem:[#allocation2 + $0x8] sm:$0xff]
    %v212 = vld [vmem:[#allocation2 + $0x10] sm:$0xff]
    %v213 = vld [vmem:[#allocation2 + $0x18] sm:$0xff]
    %v214 = vadd.f32 %v210, %v206
    %v215 = vadd.f32 %v211, %v207
    %v216 = vadd.f32 %v212, %v208
    %v217 = vadd.f32 %v213, %v209
    %vm218 = vcmask 31744
    %219 = vst.msk [vmem:[#allocation2] sm:$0xff] %vm218, %v214
    %220 = vst.msk [vmem:[#allocation2 + $0x8] sm:$0xff] %vm218, %v215
    %221 = vst.msk [vmem:[#allocation2 + $0x10] sm:$0xff] %vm218, %v216
    %222 = vst.msk [vmem:[#allocation2 + $0x18] sm:$0xff] %vm218, %v217
    // Predicated region
    $region14: #{tpu_custom_call.1} parent=1 // pred_check
      %p223 = pneg %p12
    $region15: #{tpu_custom_call.1} parent=1 // pred_check_branch
      %225 = sbr.rel (%p223) target = $region17
    $region16: #{tpu_custom_call.1} parent=1 // pred_region
      %v226 = vld [vmem:[#allocation2] sm:$0xff]
      %v227 = vld [vmem:[#allocation2 + $0x8] sm:$0xff]
      %v228 = vld [vmem:[#allocation2 + $0x10] sm:$0xff]
      %v229 = vld [vmem:[#allocation2 + $0x18] sm:$0xff]
      %v230 = vsel %vm218, %v226, 0.0
      %v231 = vsel %vm218, %v227, 0.0
      %v232 = vadd.f32 %v230, %v231
      %v233 = vsel %vm218, %v228, 0.0
      %v234 = vadd.f32 %v232, %v233
      %v235 = vsel %vm218, %v229, 0.0
      %v236 = vadd.f32 %v234, %v235
      %237 = vadd.xlane.f32.xlu0 %v236
      %v238 = vpop.xlane.xlu0 %237
      %v239 = vrot.slane %v238, 4
      %v240 = vadd.f32 %v238, %v239
      %v241 = vrot.slane %v240, 2
      %v242 = vadd.f32 %v240, %v241
      %v243 = vrot.slane %v242, 1
      %v244 = vadd.f32 %v242, %v243
      %s245 = vtos %v244
      %s246 = scalar_lea.smem [#allocation3], 0
      %247 = sst [smem:[%s246]] %s245
    $region17: #{tpu_custom_call.1} parent=1 // pred_fallthru
      _
    // Predicated region
    $region18: #{tpu_custom_call.1} parent=1 // pred_check
      _
    $region19: #{tpu_custom_call.1} parent=1 // pred_check_branch
      %249 = sbr.rel (0) target = $region21
    $region20: #{tpu_custom_call.1} parent=1 // pred_region
      %s251 = ssub.s32 16, 16
      %252 = vsyncadd [#allocation4], %s251
      %255 = dma.smem_to_hbm [#allocation3], 16, %s2, [#allocation4]
    $region21: #{tpu_custom_call.1} parent=1 // pred_fallthru
      _
    // Predicated region
    $region22: #{tpu_custom_call.1} parent=1 // pred_check
      _
    $region23: #{tpu_custom_call.1} parent=1 // pred_check_branch
      %257 = sbr.rel (0) target = $region25
    $region24: #{tpu_custom_call.1} parent=1 // pred_region
      %258 = dma.done [#allocation4], 16
    $region25: #{tpu_custom_call.1} parent=1 // pred_fallthru
      _
    %259 = sfence
    %260 = vsyncpa [#allocation4], 1

</llo_original>
